<compile_context>
chip_gen: v7x
topology: tpu7x:2x2x1
jax: 0.10.0
libtpu: 0.0.40
codegen_flags: <defaults>
</compile_context>

<pallas_src>
import jax
import jax.numpy as jnp
from jax.experimental import pallas as pl
from jax.experimental.pallas import tpu as pltpu

# Lane-dense layout / tiling constants.
_COLS = 512                    # lane width: multiple of 128 -> unmasked stores
_ROW_ALIGN = 8                 # sublane alignment for row blocks
_MAX_BLOCK_ROWS = 2048         # 2048 x 512 f32 = 4 MiB per block buffer
_MIN_GRID_STEPS = 4            # >=2 shards across v7x's 2 TCs; 4 lets each pipeline
_VMEM_LIMIT_BYTES = 32 * 1024 * 1024


# ---------------------------------------------------------------------------
# Backward kernel: o = g * (-lambda)
# ---------------------------------------------------------------------------
def _neg_scale_kernel(lam_ref, g_ref, o_ref):
    # lam_ref: (1,) f32 in SMEM.  Negation folded into the scalar; multiply in
    # f32 and downcast once so bf16 grads match an f32 reference.
    neg_lam = -lam_ref[0]
    o_ref[...] = (g_ref[...].astype(jnp.float32) * neg_lam).astype(o_ref.dtype)


def _round_up(x, m):
    return ((x + m - 1) // m) * m


def _choose_block_rows(rows):
    """Sublane-aligned row block; aim for a few grid steps (v7x megacore +
    pipelining) without exceeding the VMEM-friendly max block."""
    if rows <= 2 * _ROW_ALIGN:
        return rows
    target = _round_up(pl.cdiv(rows, _MIN_GRID_STEPS), _ROW_ALIGN)
    return max(_ROW_ALIGN, min(target, _MAX_BLOCK_ROWS))


def _neg_scale_main(g2d, lam):
    rows, cols = g2d.shape
    block_rows = _choose_block_rows(rows)
    grid = (pl.cdiv(rows, block_rows),)
    itemsize = jnp.dtype(g2d.dtype).itemsize
    return pl.pallas_call(
        _neg_scale_kernel,
        out_shape=jax.ShapeDtypeStruct((rows, cols), g2d.dtype),
        grid=grid,
        in_specs=[
            pl.BlockSpec(memory_space=pltpu.MemorySpace.SMEM),    # lambda scalar
            pl.BlockSpec((block_rows, cols), lambda i: (i, 0)),   # grad tile
        ],
        out_specs=pl.BlockSpec((block_rows, cols), lambda i: (i, 0)),
        # Cotangent is dead after this op: alias it to the output.
        input_output_aliases={1: 0},
        cost_estimate=pl.CostEstimate(
            flops=rows * cols,
            transcendentals=0,
            bytes_accessed=2 * rows * cols * itemsize,
        ),
        compiler_params=pltpu.CompilerParams(
            dimension_semantics=("parallel",),
            vmem_limit_bytes=_VMEM_LIMIT_BYTES,
        ),
    )(lam, g2d)


def _neg_scale_pallas(g, lambda_):
    orig_shape = g.shape
    orig_dtype = g.dtype
    n = g.size
    lam = jnp.asarray(lambda_, dtype=jnp.float32).reshape(1)

    flat = g.reshape(-1)                  # zero-copy
    n_main = (n // _COLS) * _COLS         # 512-divisible prefix

    if n_main == 0:
        # Tiny gradient: a fused XLA multiply already hits roofline.
        return ((flat.astype(jnp.float32) * (-lam[0]))
                .astype(orig_dtype).reshape(orig_shape))

    prefix = flat if n_main == n else flat[:n_main]
    g2d = prefix.reshape(n_main // _COLS, _COLS)
    main_out = _neg_scale_main(g2d, lam).reshape(-1)

    if n_main == n:
        return main_out.reshape(orig_shape)

    # Ragged tail (< 512 elements): tiny fused multiply — no pad, no slice of
    # the full-size array.
    tail = flat[n_main:]
    tail_out = (tail.astype(jnp.float32) * (-lam[0])).astype(orig_dtype)
    return jnp.concatenate([main_out, tail_out]).reshape(orig_shape)


# ---------------------------------------------------------------------------
# Gradient reversal op with custom VJP.
#   forward : identity (no kernel, zero cost)
#   backward: Pallas kernel computing -lambda * grad
# lambda_ is a regular (runtime) argument so schedule changes don't recompile.
# ---------------------------------------------------------------------------
@jax.custom_vjp
def gradient_reversal(x, lambda_):
    return x


def _grl_fwd(x, lambda_):
    return x, (lambda_,)


def _grl_bwd(res, g):
    (lambda_,) = res
    return (_neg_scale_pallas(g, lambda_), jnp.zeros_like(lambda_))


gradient_reversal.defvjp(_grl_fwd, _grl_bwd)


class GradientReversalLayer:
    """JAX/Pallas equivalent of the PyTorch GradientReversalLayer module."""

    def __init__(self, lambda_=1.0):
        # Stored as a runtime array -> no retrace/recompile per lambda value.
        self.lambda_ = jnp.asarray(lambda_, dtype=jnp.float32)

    def __call__(self, x):
        return gradient_reversal(x, self.lambda_)


# ---------------------------------------------------------------------------
# Main
# ---------------------------------------------------------------------------
if __name__ == "__main__":
    key = jax.random.PRNGKey(0)
    # NCHW, matching the PyTorch convention for image-like inputs.
    x = jax.random.normal(key, (2, 4, 16, 16), dtype=jnp.float32)

    lam = 0.7
    layer = GradientReversalLayer(lambda_=lam)

    # Forward pass: pure identity, no kernel launch.
    y = jax.block_until_ready(layer(x))
    assert y.shape == x.shape and y.dtype == x.dtype
    assert bool(jnp.all(y == x))

    # Backward pass runs the Pallas neg-scale kernel (2048 elems -> (4, 512)).
    loss_fn = lambda inp: jnp.sum(layer(inp) * 2.0)
    grad = jax.block_until_ready(jax.grad(loss_fn)(x))
    # d/dx sum(2*x) = 2, reversed with lambda=0.7 -> -1.4 everywhere.
    assert bool(jnp.allclose(grad, -2.0 * lam, rtol=1e-6, atol=1e-6))

    # Same thing under jit (production path; lets XLA use the in/out alias).
    grad_jit = jax.block_until_ready(jax.jit(jax.grad(loss_fn))(x))
    assert bool(jnp.allclose(grad_jit, -2.0 * lam, rtol=1e-6, atol=1e-6))

    # Ragged shape: 3*5*7*11 = 1155 elems -> 1024-elem kernel prefix +
    # 131-elem fused-XLA tail (no pad, no full-array slice).
    x2 = jax.random.normal(jax.random.PRNGKey(1), (3, 5, 7, 11), dtype=jnp.float32)
    g2 = jax.block_until_ready(jax.grad(lambda a: jnp.sum(layer(a) * 3.0))(x2))
    assert bool(jnp.allclose(g2, -3.0 * lam, rtol=1e-6, atol=1e-6))

    print("KERNEL_OK")
</pallas_src>

<mosaic_0001>
module attributes {stable_mosaic.version = 11 : i64} {
  func.func @_neg_scale_kernel(%arg0: i32, %arg1: memref<1xf32, #tpu.memory_space<smem>>, %arg2: memref<4x512xf32, #tpu.memory_space<vmem>>, %arg3: memref<4x512xf32, #tpu.memory_space<vmem>>) attributes {dimension_semantics = [#tpu.dimension_semantics<parallel>], iteration_bounds = array<i64: 1>, scalar_prefetch = 0 : i64, scratch_operands = 0 : i64, tpu.core_type = #tpu.core_type<tc>, window_params = [{transform_indices = @transform_0, window_bounds = array<i64: 1>}, {transform_indices = @transform_1, window_bounds = array<i64: 4, 512>}, {transform_indices = @transform_2, window_bounds = array<i64: 4, 512>}]} {
    %c0 = arith.constant 0 : index
    %0 = memref.load %arg1[%c0] : memref<1xf32, #tpu.memory_space<smem>>
    %cst = arith.constant 0.000000e+00 : f32
    %1 = arith.subf %cst, %0 : f32
    %c0_0 = arith.constant 0 : index
    %c0_1 = arith.constant 0 : index
    %2 = vector.load %arg2[%c0_0, %c0_1] : memref<4x512xf32, #tpu.memory_space<vmem>>, vector<4x512xf32>
    %3 = vector.broadcast %1 : f32 to vector<4x512xf32>
    %4 = arith.mulf %2, %3 : vector<4x512xf32>
    %c0_2 = arith.constant 0 : index
    %c0_3 = arith.constant 0 : index
    %5 = vector.load %arg3[%c0_2, %c0_3] : memref<4x512xf32, #tpu.memory_space<vmem>>, vector<4x512xf32>
    tpu.vector_store %arg3[%c0_2, %c0_3], %4 {strides = array<i32>} : memref<4x512xf32, #tpu.memory_space<vmem>>, vector<4x512xf32>,
    return
  }
  func.func @transform_0(%arg0: i32) -> i32 {
    %c0_i32 = arith.constant 0 : i32
    %c0_i32_0 = arith.constant 0 : i32
    return %c0_i32 : i32
  }
  func.func @transform_1(%arg0: i32) -> (i32, i32) {
    %c0_i32 = arith.constant 0 : i32
    %c0_i32_0 = arith.constant 0 : i32
    return %arg0, %c0_i32 : i32, i32
  }
  func.func @transform_2(%arg0: i32) -> (i32, i32) {
    %c0_i32 = arith.constant 0 : i32
    %c0_i32_0 = arith.constant 0 : i32
    return %arg0, %c0_i32 : i32, i32
  }
}

</mosaic_0001>

<llo_original>
// kernel: tpu_custom_call.1
$region0: #{tpu_custom_call.1}
  #allocation0 [shape = 'u32[]', space=smem, size = 0x4, offset = 0x4, fixed_abs, tag = 'smem constant byte address 0x4 - core index']
  #allocation1 [shape = 'u32[144,128]{1,0:T(1,128)}', space=vmem, size = 0x12000, scoped, tag = 'internal scratch']
  #allocation2 [shape = 'f32[1]{0:T(128)S(6)}', space=smem, size = 0x200, scoped, tag = 'scoped memory for tpu_custom_call.1']
  %s0 = inlined_call_operand.<no memory space> [shape: f32[1], index: 0, kind: input, shape index: {}]
  %s1 = inlined_call_operand.hbm [shape: f32[4,512], index: 1, kind: input, shape index: {}, may-alias: {1,2}]
  %s2 = inlined_call_operand.hbm [shape: f32[4,512], index: 2, kind: output, shape index: {}, may-alias: {1,2}]
  %s3 = sld [smem:[#allocation0]]
  $region22: #{tpu_custom_call.1} parent=0
    _
  %s5 = ssub.s32 1, %s3
  %s6 = scalar_select 0, %s5, %s3
  %7 = sst [smem:[#allocation2]] %s0
  $region1: #{tpu_custom_call.1} parent=0
    #allocation3 [shape = 'u8[8192]{0}', space=vmem, size = 0x2000, scoped, tag = 'input window, operand 1, single buffered']
    #allocation4 [shape = 's32[1]{0}', space=sflag, size = 0x4, scoped, tag = 'scoped memory for tpu_custom_call.1']
    #allocation5 [shape = 's32[1]{0}', space=sflag, size = 0x4, scoped, tag = 'scoped memory for tpu_custom_call.1']
    #allocation6 [shape = 'u8[8192]{0}', space=vmem, size = 0x2000, scoped, tag = 'output window, operand 0, single buffered']
    %8 = vsyncpa [#allocation4], 0
    %9 = vsyncpa [#allocation5], 0
    // Predicated region
    $region2: #{tpu_custom_call.1} parent=1 // pred_check
      _
    $region3: #{tpu_custom_call.1} parent=1 // pred_check_branch
      %11 = sbr.rel (0) target = $region5
    $region4: #{tpu_custom_call.1} parent=1 // pred_region
      _
    $region5: #{tpu_custom_call.1} parent=1 // pred_fallthru
      _
    // Predicated region
    $region6: #{tpu_custom_call.1} parent=1 // pred_check
      _
    $region7: #{tpu_custom_call.1} parent=1 // pred_check_branch
      %13 = sbr.rel (0) target = $region9
    $region8: #{tpu_custom_call.1} parent=1 // pred_region
      %s15 = ssub.s32 256, 256
      %16 = vsyncadd [#allocation4], %s15
      %s18 = sshll.u32 [#allocation3], 4
      %s19 = int_to_ptr.vmem [resolvable:$true] %s18
      %21 = dma.hbm_to_vmem [thread:$0]  %s1, 256, %s19, [#allocation4]
    $region9: #{tpu_custom_call.1} parent=1 // pred_fallthru
      _
    // Predicated region
    $region10: #{tpu_custom_call.1} parent=1 // pred_check
      _
    $region11: #{tpu_custom_call.1} parent=1 // pred_check_branch
      %23 = sbr.rel (0) target = $region13
    $region12: #{tpu_custom_call.1} parent=1 // pred_region
      %24 = dma.done [#allocation4], 256
    $region13: #{tpu_custom_call.1} parent=1 // pred_fallthru
      _
    %s25 = sld [smem:[#allocation2]]
    %s26 = ssub.f32 0.0, %s25
    %v27 = vld [vmem:[#allocation3] sm:$0xff]
    %v28 = vld [vmem:[#allocation3 + $0x8] sm:$0xff]
    %v29 = vstv %s26
    %v30 = vmul.f32 %v27, %v29
    %v31 = vmul.f32 %v28, %v29
    %32 = vst [vmem:[#allocation6] sm:$0xff] %v30
    %33 = vst [vmem:[#allocation6 + $0x8] sm:$0xff] %v31
    // Predicated region
    $region14: #{tpu_custom_call.1} parent=1 // pred_check
      _
    $region15: #{tpu_custom_call.1} parent=1 // pred_check_branch
      %35 = sbr.rel (0) target = $region17
    $region16: #{tpu_custom_call.1} parent=1 // pred_region
      %s37 = ssub.s32 256, 256
      %38 = vsyncadd [#allocation5], %s37
      %s40 = sshll.u32 [#allocation6], 4
      %s41 = int_to_ptr.vmem [resolvable:$true] %s40
      %43 = dma.vmem_to_hbm [thread:$0]  %s41, 256, %s2, [#allocation5]
    $region17: #{tpu_custom_call.1} parent=1 // pred_fallthru
      _
    // Predicated region
    $region18: #{tpu_custom_call.1} parent=1 // pred_check
      _
    $region19: #{tpu_custom_call.1} parent=1 // pred_check_branch
      %45 = sbr.rel (0) target = $region21
    $region20: #{tpu_custom_call.1} parent=1 // pred_region
      %46 = dma.done [#allocation5], 256
    $region21: #{tpu_custom_call.1} parent=1 // pred_fallthru
      _
    %47 = vsyncpa [#allocation4], 1
    %48 = vsyncpa [#allocation5], 1

</llo_original>
